<compile_context>
chip_gen: v6e
topology: v6e:2x2x1
jax: 0.10.0
libtpu: 0.0.40
codegen_flags: <defaults>
</compile_context>

<pallas_src>
import jax
import jax.numpy as jnp
from jax.experimental import pallas as pl
from jax.experimental.pallas import tpu as pltpu

# Module __init__ default: negative_slope=0 (deliberately not LeakyReLU's 0.01).
NEGATIVE_SLOPE = 0.0

# Deterministic "parameter" from the module source: linear weight, shape (1, 8).
LINEAR_WEIGHT = jnp.array(
    [[1.78790387, -0.01625918, 0.01750951, 1.26051818,
      -0.49119654, -0.50248609, -0.50834412, -0.00280192]],
    dtype=jnp.float32,
)


def _linear_leakyrelu_kernel(x_ref, w_ref, o_ref):
    # x_ref: (B, F), w_ref: (1, F) f32, o_ref: (B, 1) f32 — full blocks in VMEM.
    # Cast in-kernel (no-op when the input is already f32; on v5e this keeps the
    # multiply/reduce on the f32 VPU path if bf16 inputs ever show up).
    x = x_ref[...].astype(jnp.float32)
    w = w_ref[...]
    # Degenerate matmul (K=8, N=1): VPU broadcast-multiply + XLU lane reduce
    # instead of paying MXU push / result-FIFO pop latency.
    y = jnp.sum(x * w, axis=-1, keepdims=True)  # (B, 1), f32
    if NEGATIVE_SLOPE == 0.0:
        # v3/v4/v5 collapse to ReLU when the slope is zero.
        o_ref[...] = jnp.maximum(y, 0.0)
    else:
        o_ref[...] = jnp.where(y > 0, y, y * NEGATIVE_SLOPE)


def model_forward(x1):
    # v1 = x1.flatten(start_dim=1): only emit a reshape when it is not already a
    # no-op, so the (2, 8) case reaches pallas_call with zero preceding XLA ops.
    v1 = x1 if x1.ndim == 2 else x1.reshape(x1.shape[0], -1)
    B = v1.shape[0]

    out = pl.pallas_call(
        _linear_leakyrelu_kernel,
        out_shape=jax.ShapeDtypeStruct((B, 1), jnp.float32),
        in_specs=[
            pl.BlockSpec(memory_space=pltpu.MemorySpace.VMEM),  # activations (B, F)
            pl.BlockSpec(memory_space=pltpu.MemorySpace.VMEM),  # weight row (1, F)
        ],
        out_specs=pl.BlockSpec(memory_space=pltpu.MemorySpace.VMEM),
    )(v1, LINEAR_WEIGHT)
    return out  # shape (B, 1) == v5


model_forward_jit = jax.jit(model_forward)


if __name__ == "__main__":
    key = jax.random.PRNGKey(0)
    x1 = jax.random.normal(key, (2, 8), dtype=jnp.float32)

    out = model_forward_jit(x1)
    jax.block_until_ready(out)

    # Pure-JAX reference (linear + leaky-relu with slope 0).
    ref = x1 @ LINEAR_WEIGHT.T
    ref = jnp.where(ref > 0, ref, ref * NEGATIVE_SLOPE)
    assert out.shape == (2, 1), out.shape
    assert jnp.allclose(out, ref, atol=1e-5), (out, ref)

    print("KERNEL_OK")
</pallas_src>

<mosaic_0001>
module attributes {stable_mosaic.version = 11 : i64} {
  func.func @_linear_leakyrelu_kernel(%arg0: memref<2x8xf32, #tpu.memory_space<vmem>>, %arg1: memref<1x8xf32, #tpu.memory_space<vmem>>, %arg2: memref<2x1xf32, #tpu.memory_space<vmem>>) attributes {dimension_semantics = [], scalar_prefetch = 0 : i64, scratch_operands = 0 : i64, tpu.core_type = #tpu.core_type<tc>} {
    %c0 = arith.constant 0 : index
    %c0_0 = arith.constant 0 : index
    %0 = vector.load %arg0[%c0, %c0_0] : memref<2x8xf32, #tpu.memory_space<vmem>>, vector<2x8xf32>
    %c0_1 = arith.constant 0 : index
    %c0_2 = arith.constant 0 : index
    %1 = vector.load %arg1[%c0_1, %c0_2] : memref<1x8xf32, #tpu.memory_space<vmem>>, vector<1x8xf32>
    %2 = vector.broadcast %1 : vector<1x8xf32> to vector<2x8xf32>
    %3 = arith.mulf %0, %2 : vector<2x8xf32>
    %cst = arith.constant dense<0.000000e+00> : vector<2xf32>
    %4 = vector.multi_reduction <add>, %3, %cst [1] : vector<2x8xf32> to vector<2xf32>
    %5 = vector.shape_cast %4 : vector<2xf32> to vector<2x1xf32>
    %cst_3 = arith.constant 0.000000e+00 : f32
    %6 = vector.broadcast %cst_3 : f32 to vector<2x1xf32>
    %7 = arith.maximumf %5, %6 : vector<2x1xf32>
    %c0_4 = arith.constant 0 : index
    %c0_5 = arith.constant 0 : index
    %8 = vector.load %arg2[%c0_4, %c0_5] : memref<2x1xf32, #tpu.memory_space<vmem>>, vector<2x1xf32>
    tpu.vector_store %arg2[%c0_4, %c0_5], %7 {strides = array<i32>} : memref<2x1xf32, #tpu.memory_space<vmem>>, vector<2x1xf32>,
    return
  }
}

</mosaic_0001>

<llo_original>
// kernel: model_forward.1
$region0: #{model_forward.1}
  #allocation0 [shape = 'u32[]', space=smem, size = 0x4, offset = 0x4, fixed_abs, tag = 'smem constant byte address 0x4 - core index']
  #allocation1 [shape = 'u32[144,128]{1,0:T(1,128)}', space=vmem, size = 0x12000, scoped, tag = 'internal scratch']
  %s0 = inlined_call_operand.hbm [shape: f32[2,8], index: 0, kind: input, shape index: {}]
  %s1 = inlined_call_operand.vmem [shape: f32[1,8], index: 1, kind: input, shape index: {}]
  %s2 = inlined_call_operand.vmem [shape: f32[2,1], index: 2, kind: output, shape index: {}]
  %s3 = sld [smem:[#allocation0]]
  $region22: #{model_forward.1} parent=0
    _
  %s5 = ssub.s32 1, %s3
  %s6 = scalar_select 0, %s5, %s3
  $region1: #{model_forward.1} parent=0
    #allocation2 [shape = 'u8[1024]{0}', space=vmem, size = 0x400, scoped, tag = 'input window, operand 0, single buffered']
    #allocation3 [shape = 's32[1]{0}', space=sflag, size = 0x4, scoped, tag = 'scoped memory for model_forward.1']
    %7 = vsyncpa [#allocation3], 0
    // Predicated region
    $region2: #{model_forward.1} parent=1 // pred_check
      _
    $region3: #{model_forward.1} parent=1 // pred_check_branch
      %9 = sbr.rel (0) target = $region5
    $region4: #{model_forward.1} parent=1 // pred_region
      %s11 = ssub.s32 32, 32
      %12 = vsyncadd [#allocation3], %s11
      %s14 = sshll.u32 [#allocation2], 4
      %s15 = int_to_ptr.vmem [resolvable:$true] %s14
      %17 = dma.hbm_to_vmem [thread:$0]  %s0, 32, %s15, [#allocation3]
    $region5: #{model_forward.1} parent=1 // pred_fallthru
      _
    // Predicated region
    $region6: #{model_forward.1} parent=1 // pred_check
      _
    $region7: #{model_forward.1} parent=1 // pred_check_branch
      %19 = sbr.rel (0) target = $region9
    $region8: #{model_forward.1} parent=1 // pred_region
      _
    $region9: #{model_forward.1} parent=1 // pred_fallthru
      _
    // Predicated region
    $region10: #{model_forward.1} parent=1 // pred_check
      _
    $region11: #{model_forward.1} parent=1 // pred_check_branch
      %21 = sbr.rel (0) target = $region13
    $region12: #{model_forward.1} parent=1 // pred_region
      %22 = dma.done [#allocation3], 32
    $region13: #{model_forward.1} parent=1 // pred_fallthru
      _
    %v23 = vld [vmem:[#allocation2] sm:$0x3]
    %v24 = vld [vmem:[%s1] sm:$0x1]
    %v26 = vlaneseq
    %v27 = vshrl.u32 %v26, 7
    %v28 = vsub.s32 0, %v27
    %v29 = vrot.slane %v24, %v28
    %v31 = vmul.f32 %v23, %v29
    %vm32 = vcmask 58368
    %v33 = vsel %vm32, %v31, 0.0
    %34 = vadd.xlane.f32.xlu0 %v33
    %v35 = vpop.xlane.xlu0 %34
    %v36 = vmax.f32 %v35, 0.0
    %vm37 = vcmask 1024
    %38 = vst.msk [vmem:[%s2] sm:$0x3] %vm37, %v36
    // Predicated region
    $region14: #{model_forward.1} parent=1 // pred_check
      _
    $region15: #{model_forward.1} parent=1 // pred_check_branch
      %40 = sbr.rel (0) target = $region17
    $region16: #{model_forward.1} parent=1 // pred_region
      _
    $region17: #{model_forward.1} parent=1 // pred_fallthru
      _
    // Predicated region
    $region18: #{model_forward.1} parent=1 // pred_check
      _
    $region19: #{model_forward.1} parent=1 // pred_check_branch
      %42 = sbr.rel (0) target = $region21
    $region20: #{model_forward.1} parent=1 // pred_region
      _
    $region21: #{model_forward.1} parent=1 // pred_fallthru
      _
    %43 = vsyncpa [#allocation3], 1

</llo_original>
